<compile_context>
chip_gen: v7x
topology: tpu7x:2x2x1
jax: 0.10.0
libtpu: 0.0.40
codegen_flags: <defaults>
</compile_context>

<pallas_src>
import numpy as np
import jax
import jax.numpy as jnp
from jax.experimental import pallas as pl
from jax.experimental.pallas import tpu as pltpu


def _centered_ortho_dft_matrix(n):
    """M such that M @ x == fftshift(fft(ifftshift(x), norm='ortho')) along axis 0."""
    eye = np.eye(n, dtype=np.complex64)
    m = np.fft.fftshift(
        np.fft.fft(np.fft.ifftshift(eye, axes=0), axis=0, norm="ortho"), axes=0)
    return m.astype(np.complex64)


def _largest_divisor_leq(n, cap):
    for t in range(min(n, cap), 0, -1):
        if n % t == 0:
            return t
    return n


def _noise_mix_kernel(l_ref, n_ref, o_ref):
    # cholesky_noise_sigma @ noise.reshape(C, -1), one K-tile per grid step (MXU).
    o_ref[...] = jnp.dot(l_ref[...], n_ref[...], preferred_element_type=jnp.float32)


def _make_sense_fft_kernel(num_mps, tile_c, use_noise):
    def kernel(*refs):
        if use_noise:
            (xr_ref, xi_ref, sr_ref, si_ref, nsr_ref, nsi_ref,
             fhr_ref, fhi_ref, fwtr_ref, fwti_ref, yr_ref, yi_ref) = refs
        else:
            (xr_ref, xi_ref, sr_ref, si_ref,
             fhr_ref, fhi_ref, fwtr_ref, fwti_ref, yr_ref, yi_ref) = refs
            nsr_ref = nsi_ref = None

        h = fhr_ref.shape[0]
        w = fwtr_ref.shape[0]
        bf = jnp.bfloat16

        # ---- load the image block once (it is re-used by every map set)
        xr = xr_ref[0]                                # (M, H, W)
        xi = xi_ref[0]

        # ---- complex multiply + sum over map sets m (FFT is linear, so summing the
        #      coil-weighted images BEFORE the FFT is exact).  Pure VPU work.
        zr = jnp.zeros((tile_c, h, w), jnp.float32)
        zi = jnp.zeros((tile_c, h, w), jnp.float32)
        for m in range(num_mps):                      # static, tiny
            xrm = xr[m]                               # (H, W)
            xim = xi[m]
            srm = sr_ref[m]                           # (TILE_C, H, W)
            sim = si_ref[m]
            zr = zr + srm * xrm - sim * xim
            zi = zi + srm * xim + sim * xrm

        # ---- stage 1: row FFT  T[c] = Fh @ Z[c]
        #      Gauss 3-mult complex matmul, bf16 operands, f32 accumulation.
        fhr = fhr_ref[...]                            # (H, H) bf16
        fhi = fhi_ref[...]
        fhs = fhr + fhi                               # hoisted out of the c loop
        t_r, t_i = [], []
        for c in range(tile_c):                       # static, small per channel tile
            ar = zr[c].astype(bf)
            ai = zi[c].astype(bf)
            p1 = jnp.dot(fhr, ar, preferred_element_type=jnp.float32)
            p2 = jnp.dot(fhi, ai, preferred_element_type=jnp.float32)
            p3 = jnp.dot(fhs, ar + ai, preferred_element_type=jnp.float32)
            t_r.append(p1 - p2)
            t_i.append(p3 - p1 - p2)
        tr = jnp.concatenate(t_r, axis=0)             # (TILE_C*H, W) f32
        ti = jnp.concatenate(t_i, axis=0)

        # ---- stage 2: column FFT, batched over the whole channel tile in ONE wide
        #      complex matmul (MXU M-dim = TILE_C*H), Gauss 3-mult again.
        fwtr = fwtr_ref[...]                          # (W, W) bf16
        fwti = fwti_ref[...]
        fwts = fwtr + fwti
        br = tr.astype(bf)
        bi = ti.astype(bf)
        q1 = jnp.dot(br, fwtr, preferred_element_type=jnp.float32)
        q2 = jnp.dot(bi, fwti, preferred_element_type=jnp.float32)
        q3 = jnp.dot(br + bi, fwts, preferred_element_type=jnp.float32)
        kr = (q1 - q2).reshape(tile_c, h, w)
        ki = (q3 - q1 - q2).reshape(tile_c, h, w)

        # ---- add the (b-independent, m-summed) colour-mixed noise once
        if use_noise:
            kr = kr + nsr_ref[...]
            ki = ki + nsi_ref[...]

        yr_ref[0] = kr
        yi_ref[0] = ki
    return kernel


class ForwardModelCoilEstimatedNoiseCovarianceSoftSENSE:
    def __init__(self, noise_sigma, num_channels, img_shape, num_mps, mask,
                 maximum_likelihood=False):
        self.noise_sigma = noise_sigma
        self.num_channels = num_channels
        self.img_shape = tuple(img_shape)
        self.num_mps = num_mps
        self.maximum_likelihood = maximum_likelihood
        self.mask = np.asarray(mask, dtype=bool)      # broadcastable to [B,C,H,W,2]

        h, w = self.img_shape
        fh = _centered_ortho_dft_matrix(h)            # acts on rows (H axis)
        fw = _centered_ortho_dft_matrix(w)            # acts on cols (W axis)
        # bf16 operands feed the MXU at full rate on v6e/v7x; accumulation stays f32.
        self._fh_r = jnp.asarray(fh.real, jnp.bfloat16)
        self._fh_i = jnp.asarray(fh.imag, jnp.bfloat16)
        self._fwt_r = jnp.asarray(fw.T.real, jnp.bfloat16)
        self._fwt_i = jnp.asarray(fw.T.imag, jnp.bfloat16)

    def _mixed_noise_sum(self, cholesky_noise_sigma, key):
        """chol @ N(0,1).reshape(C,-1), reshaped back and summed over the map-set axis."""
        M, C = self.num_mps, self.num_channels
        H, W = self.img_shape
        noise = jax.random.normal(key, (M, C, H, W, 2), dtype=jnp.float32)
        noise_flat = noise.reshape(C, -1)             # literal torch reshape
        K = noise_flat.shape[1]
        tile_k = next((t for t in (32768, 16384, 8192, 4096, 2048, 1024, 512, 256, 128)
                       if K % t == 0), K)
        mixed = pl.pallas_call(
            _noise_mix_kernel,
            out_shape=jax.ShapeDtypeStruct((C, K), jnp.float32),
            grid=(K // tile_k,),
            in_specs=[pl.BlockSpec((C, C), lambda k: (0, 0)),
                      pl.BlockSpec((C, tile_k), lambda k: (0, k))],
            out_specs=pl.BlockSpec((C, tile_k), lambda k: (0, k)),
            compiler_params=pltpu.CompilerParams(dimension_semantics=("parallel",)),
        )(cholesky_noise_sigma.astype(jnp.float32), noise_flat)
        mixed = mixed.reshape(M, C, H, W, 2)          # literal torch reshape back
        # The noise only enters the output through sum over dim=1 (map sets) and is
        # independent of b — hoist that reduction out of the main kernel.
        return mixed.sum(axis=0)                      # (C, H, W, 2)

    def __call__(self, image, coil_est, cholesky_noise_sigma, key):
        """image: [B, M, H, W, 2]; coil_est: [M, C, H, W, 2]; cholesky: [C, C]."""
        B = image.shape[0]
        M, C = self.num_mps, self.num_channels
        H, W = self.img_shape
        use_noise = not self.maximum_likelihood

        # ---- planar real/imag split (glue)
        xr = image[..., 0].astype(jnp.float32)
        xi = image[..., 1].astype(jnp.float32)
        sr = coil_est[..., 0].astype(jnp.float32)
        si = coil_est[..., 1].astype(jnp.float32)

        tile_c = _largest_divisor_leq(C, 8)
        n_ct = C // tile_c

        in_specs = [
            pl.BlockSpec((1, M, H, W), lambda ct, b: (b, 0, 0, 0)),       # xr
            pl.BlockSpec((1, M, H, W), lambda ct, b: (b, 0, 0, 0)),       # xi
            pl.BlockSpec((M, tile_c, H, W), lambda ct, b: (0, ct, 0, 0)), # sr (b-resident)
            pl.BlockSpec((M, tile_c, H, W), lambda ct, b: (0, ct, 0, 0)), # si (b-resident)
        ]
        args = [xr, xi, sr, si]

        if use_noise:
            nsum = self._mixed_noise_sum(cholesky_noise_sigma, key)
            args += [nsum[..., 0], nsum[..., 1]]
            in_specs += [
                pl.BlockSpec((tile_c, H, W), lambda ct, b: (ct, 0, 0)),   # noise r
                pl.BlockSpec((tile_c, H, W), lambda ct, b: (ct, 0, 0)),   # noise i
            ]
        # else: skip RNG + noise-mix kernel entirely (no dead work in ML mode)

        in_specs += [
            pl.BlockSpec((H, H), lambda ct, b: (0, 0)),                   # Fh real
            pl.BlockSpec((H, H), lambda ct, b: (0, 0)),                   # Fh imag
            pl.BlockSpec((W, W), lambda ct, b: (0, 0)),                   # Fw^T real
            pl.BlockSpec((W, W), lambda ct, b: (0, 0)),                   # Fw^T imag
        ]
        args += [self._fh_r, self._fh_i, self._fwt_r, self._fwt_i]

        kernel = _make_sense_fft_kernel(M, tile_c, use_noise)
        yr, yi = pl.pallas_call(
            kernel,
            out_shape=[jax.ShapeDtypeStruct((B, C, H, W), jnp.float32),
                       jax.ShapeDtypeStruct((B, C, H, W), jnp.float32)],
            grid=(n_ct, B),   # b innermost: coil/noise/DFT tiles stay resident
            in_specs=in_specs,
            out_specs=[pl.BlockSpec((1, tile_c, H, W), lambda ct, b: (b, ct, 0, 0)),
                       pl.BlockSpec((1, tile_c, H, W), lambda ct, b: (b, ct, 0, 0))],
            compiler_params=pltpu.CompilerParams(
                dimension_semantics=("parallel", "parallel")),
        )(*args)

        # ---- y[mask.expand_as(y)].reshape(B, C, -1)
        # mask is a fixed buffer -> indices are static; boolean compaction is done as
        # a static gather in plain JAX (data-dependent output shapes have no Pallas
        # equivalent).
        y = jnp.stack([yr, yi], axis=-1)                                  # (B,C,H,W,2)
        mask_full = np.broadcast_to(self.mask, (B, C, H, W, 2))
        flat_idx = jnp.asarray(np.flatnonzero(mask_full), dtype=jnp.int32)
        return jnp.take(y.reshape(-1), flat_idx).reshape(B, C, -1)


if __name__ == "__main__":
    # small shapes consistent with the module
    B, M, C, H, W = 2, 2, 4, 16, 16
    noise_sigma = 0.05

    key = jax.random.PRNGKey(0)
    k_img, k_coil, k_noise = jax.random.split(key, 3)
    image = jax.random.normal(k_img, (B, M, H, W, 2), dtype=jnp.float32)
    coil_est = jax.random.normal(k_coil, (M, C, H, W, 2), dtype=jnp.float32)
    # deterministic lower-triangular cholesky factor of the noise covariance
    chol_np = noise_sigma * np.eye(C, dtype=np.float32) \
        + 0.01 * np.tril(np.ones((C, C), dtype=np.float32), k=-1)
    cholesky_noise_sigma = jnp.asarray(chol_np)

    # k-space sampling mask, broadcastable to [B, C, H, W, 2]
    mask_np = np.zeros((1, 1, H, W, 1), dtype=bool)
    mask_np[:, :, :, ::2, :] = True                     # every other phase-encode line
    mask_np[:, :, :, W // 2 - 2:W // 2 + 2, :] = True   # fully sampled center

    model = ForwardModelCoilEstimatedNoiseCovarianceSoftSENSE(
        noise_sigma, C, (H, W), M, mask_np, maximum_likelihood=False)

    out = model(image, coil_est, cholesky_noise_sigma, k_noise)
    out = jax.block_until_ready(out)

    # expected output width = number of selected elements per (b, c) under the
    # broadcast mask (matches torch boolean indexing + reshape(B, C, -1))
    mask_full_np = np.broadcast_to(mask_np, (B, C, H, W, 2))
    n_per_bc = int(mask_full_np.sum()) // (B * C)
    assert out.shape == (B, C, n_per_bc), (out.shape, (B, C, n_per_bc))

    # ---- plain-numpy reference (same noise draw); tolerance covers bf16 MXU operands
    img_c = np.asarray(image[..., 0] + 1j * image[..., 1])         # [B, M, H, W]
    coil_c = np.asarray(coil_est[..., 0] + 1j * coil_est[..., 1])  # [M, C, H, W]
    z = coil_c[None] * img_c[:, :, None]                           # [B, M, C, H, W]
    ksp = np.fft.fftshift(
        np.fft.fft2(np.fft.ifftshift(z, axes=(-2, -1)), axes=(-2, -1), norm="ortho"),
        axes=(-2, -1))
    noise_ref = np.asarray(jax.random.normal(k_noise, (M, C, H, W, 2), dtype=jnp.float32))
    mixed_ref = (chol_np @ noise_ref.reshape(C, -1)).reshape(M, C, H, W, 2)
    y_ref = (ksp + (mixed_ref[..., 0] + 1j * mixed_ref[..., 1])[None]).sum(axis=1)
    y_ref2 = np.stack([y_ref.real, y_ref.imag], axis=-1)           # [B, C, H, W, 2]
    sel = y_ref2.reshape(-1)[np.flatnonzero(mask_full_np)]
    ref = sel.reshape(B, C, -1)
    np.testing.assert_allclose(np.asarray(out), ref, rtol=5e-2, atol=4e-1)

    print("KERNEL_OK")
</pallas_src>

<mosaic_0001>
module attributes {stable_mosaic.version = 11 : i64} {
  func.func @_noise_mix_kernel(%arg0: i32, %arg1: memref<4x4xf32, #tpu.memory_space<vmem>>, %arg2: memref<4x1024xf32, #tpu.memory_space<vmem>>, %arg3: memref<4x1024xf32, #tpu.memory_space<vmem>>) attributes {dimension_semantics = [#tpu.dimension_semantics<parallel>], iteration_bounds = array<i64: 1>, scalar_prefetch = 0 : i64, scratch_operands = 0 : i64, tpu.core_type = #tpu.core_type<tc>, window_params = [{pipeline_mode = #tpu.pipeline_mode<synchronous>, transform_indices = @transform_0, window_bounds = array<i64: 4, 4>}, {transform_indices = @transform_1, window_bounds = array<i64: 4, 1024>}, {transform_indices = @transform_2, window_bounds = array<i64: 4, 1024>}]} {
    %c0 = arith.constant 0 : index
    %c0_0 = arith.constant 0 : index
    %0 = vector.load %arg1[%c0, %c0_0] : memref<4x4xf32, #tpu.memory_space<vmem>>, vector<4x4xf32>
    %c0_1 = arith.constant 0 : index
    %c0_2 = arith.constant 0 : index
    %1 = vector.load %arg2[%c0_1, %c0_2] : memref<4x1024xf32, #tpu.memory_space<vmem>>, vector<4x1024xf32>
    %cst = arith.constant dense<0.000000e+00> : vector<4x1024xf32>
    %2 = tpu.matmul %0, %1, %cst {dimension_numbers = #tpu.dot_dimension_numbers<[1], [0], [0], [1], [0, 0, 1, 1], [], []>} : vector<4x4xf32>, vector<4x1024xf32>, vector<4x1024xf32> -> vector<4x1024xf32>
    %c0_3 = arith.constant 0 : index
    %c0_4 = arith.constant 0 : index
    %3 = vector.load %arg3[%c0_3, %c0_4] : memref<4x1024xf32, #tpu.memory_space<vmem>>, vector<4x1024xf32>
    tpu.vector_store %arg3[%c0_3, %c0_4], %2 {strides = array<i32>} : memref<4x1024xf32, #tpu.memory_space<vmem>>, vector<4x1024xf32>,
    return
  }
  func.func @transform_0(%arg0: i32) -> (i32, i32) {
    %c0_i32 = arith.constant 0 : i32
    %c0_i32_0 = arith.constant 0 : i32
    %c0_i32_1 = arith.constant 0 : i32
    return %c0_i32, %c0_i32_0 : i32, i32
  }
  func.func @transform_1(%arg0: i32) -> (i32, i32) {
    %c0_i32 = arith.constant 0 : i32
    %c0_i32_0 = arith.constant 0 : i32
    return %c0_i32, %arg0 : i32, i32
  }
  func.func @transform_2(%arg0: i32) -> (i32, i32) {
    %c0_i32 = arith.constant 0 : i32
    %c0_i32_0 = arith.constant 0 : i32
    return %c0_i32, %arg0 : i32, i32
  }
}

</mosaic_0001>

<llo_original>
// kernel: tpu_custom_call.1
$region0: #{tpu_custom_call.1}
  #allocation0 [shape = 'u32[]', space=smem, size = 0x4, offset = 0x4, fixed_abs, tag = 'smem constant byte address 0x4 - core index']
  #allocation1 [shape = 'u32[144,128]{1,0:T(1,128)}', space=vmem, size = 0x12000, scoped, tag = 'internal scratch']
  %s0 = inlined_call_operand.hbm [shape: f32[4,4], index: 0, kind: input, shape index: {}]
  %s1 = inlined_call_operand.hbm [shape: f32[4,1024], index: 1, kind: input, shape index: {}]
  %s2 = inlined_call_operand.hbm [shape: f32[4,1024], index: 2, kind: output, shape index: {}]
  %s3 = sld [smem:[#allocation0]]
  $region26: #{tpu_custom_call.1} parent=0
    _
  %s5 = ssub.s32 1, %s3
  %s6 = scalar_select 0, %s5, %s3
  $region1: #{tpu_custom_call.1} parent=0
    #allocation2 [shape = 'u8[2048]{0}', space=vmem, size = 0x800, scoped, tag = 'input window, operand 0, single buffered']
    #allocation3 [shape = 's32[1]{0}', space=sflag, size = 0x4, scoped, tag = 'scoped memory for tpu_custom_call.1']
    #allocation4 [shape = 's32[1]{0}', space=sflag, size = 0x4, scoped, tag = 'scoped memory for tpu_custom_call.1']
    #allocation5 [shape = 'u8[16384]{0}', space=vmem, size = 0x4000, scoped, tag = 'input window, operand 1, single buffered']
    #allocation6 [shape = 's32[1]{0}', space=sflag, size = 0x4, scoped, tag = 'scoped memory for tpu_custom_call.1']
    #allocation7 [shape = 'u8[16384]{0}', space=vmem, size = 0x4000, scoped, tag = 'output window, operand 0, single buffered']
    %7 = vsyncpa [#allocation3], 0
    %8 = vsyncpa [#allocation6], 0
    %9 = vsyncpa [#allocation4], 0
    // Predicated region
    $region2: #{tpu_custom_call.1} parent=1 // pred_check
      _
    $region3: #{tpu_custom_call.1} parent=1 // pred_check_branch
      %11 = sbr.rel (0) target = $region5
    $region4: #{tpu_custom_call.1} parent=1 // pred_region
      %s13 = ssub.s32 64, 64
      %14 = vsyncadd [#allocation3], %s13
      %s16 = sshll.u32 [#allocation2], 4
      %s17 = int_to_ptr.vmem [resolvable:$true] %s16
      %19 = dma.hbm_to_vmem [thread:$0]  %s0, 64, %s17, [#allocation3]
    $region5: #{tpu_custom_call.1} parent=1 // pred_fallthru
      _
    // Predicated region
    $region6: #{tpu_custom_call.1} parent=1 // pred_check
      _
    $region7: #{tpu_custom_call.1} parent=1 // pred_check_branch
      %21 = sbr.rel (0) target = $region9
    $region8: #{tpu_custom_call.1} parent=1 // pred_region
      %s23 = ssub.s32 512, 512
      %24 = vsyncadd [#allocation6], %s23
      %s26 = sshll.u32 [#allocation5], 4
      %s27 = int_to_ptr.vmem [resolvable:$true] %s26
      %29 = dma.hbm_to_vmem [thread:$0]  %s1, 512, %s27, [#allocation6]
    $region9: #{tpu_custom_call.1} parent=1 // pred_fallthru
      _
    // Predicated region
    $region10: #{tpu_custom_call.1} parent=1 // pred_check
      _
    $region11: #{tpu_custom_call.1} parent=1 // pred_check_branch
      %31 = sbr.rel (0) target = $region13
    $region12: #{tpu_custom_call.1} parent=1 // pred_region
      %32 = dma.done [#allocation3], 64
    $region13: #{tpu_custom_call.1} parent=1 // pred_fallthru
      _
    // Predicated region
    $region14: #{tpu_custom_call.1} parent=1 // pred_check
      _
    $region15: #{tpu_custom_call.1} parent=1 // pred_check_branch
      %34 = sbr.rel (0) target = $region17
    $region16: #{tpu_custom_call.1} parent=1 // pred_region
      %35 = dma.done [#allocation6], 512
    $region17: #{tpu_custom_call.1} parent=1 // pred_fallthru
      _
    %v36 = vld [vmem:[#allocation2] sm:$0xf]
    %v37 = vld [vmem:[#allocation5] sm:$0xff]
    %v38 = vld [vmem:[#allocation5 + $0x8] sm:$0xff]
    %v39 = vld [vmem:[#allocation5 + $0x10] sm:$0xff]
    %v40 = vld [vmem:[#allocation5 + $0x18] sm:$0xff]
    %v45 = vcombine.high %v37, %v37
    %v46 = vcombine.high %v38, %v38
    %v47 = vcombine.high %v39, %v39
    %v48 = vcombine.high %v40, %v40
    %vm49 = vcmask 31744
    %v51 = vsel %vm49, %v36, 0
    %vm53 = vcmask 1043456
    %v54 = vsel %vm53, %v37, 0
    %v56 = vsel %vm53, %v45, 0
    %v58 = vsel %vm53, %v38, 0
    %v60 = vsel %vm53, %v46, 0
    %v62 = vsel %vm53, %v39, 0
    %v64 = vsel %vm53, %v47, 0
    %v66 = vsel %vm53, %v40, 0
    %v68 = vsel %vm53, %v48, 0
    %70 = vmatprep.subr.mxu0 %v56
    %71 = vmatpush1.msra.mxu0 %v54
    %72 = vmatprep.subr.mxu0 0.0
    %73 = vmatpush1.msra.mxu0 0.0
    %74 = vmatprep.subr.mxu0 0.0
    %75 = vmatpush1.msra.mxu0 0.0
    %76 = vmatprep.subr.mxu0 0.0
    %77 = vmatpush1.msra.mxu0 0.0
    %78 = vmatprep.subr.mxu0 0.0
    %79 = vmatpush1.msra.mxu0 0.0
    %80 = vmatprep.subr.mxu0 0.0
    %81 = vmatpush1.msra.mxu0 0.0
    %82 = vmatprep.subr.mxu0 0.0
    %83 = vmatpush1.msra.mxu0 0.0
    %84 = vmatprep.subr.mxu0 0.0
    %85 = vmatpush1.msra.mxu0 0.0
    %86 = vmatprep.subr.mxu0 0.0
    %87 = vmatpush1.msra.mxu0 0.0
    %88 = vmatprep.subr.mxu0 0.0
    %89 = vmatpush1.msra.mxu0 0.0
    %90 = vmatprep.subr.mxu0 0.0
    %91 = vmatpush1.msra.mxu0 0.0
    %92 = vmatprep.subr.mxu0 0.0
    %93 = vmatpush1.msra.mxu0 0.0
    %94 = vmatprep.subr.mxu0 0.0
    %95 = vmatpush1.msra.mxu0 0.0
    %96 = vmatprep.subr.mxu0 0.0
    %97 = vmatpush1.msra.mxu0 0.0
    %98 = vmatprep.subr.mxu0 0.0
    %99 = vmatpush1.msra.mxu0 0.0
    %100 = vmatprep.subr.mxu0 0.0
    %101 = vmatpush1.msra.mxu0 0.0
    %102 = vmatprep.subr.mxu0 0.0
    %103 = vmatpush1.msra.mxu0 0.0
    %104 = vmatprep.subr.mxu0 0.0
    %105 = vmatpush1.msra.mxu0 0.0
    %106 = vmatprep.subr.mxu0 0.0
    %107 = vmatpush1.msra.mxu0 0.0
    %108 = vmatprep.subr.mxu0 0.0
    %109 = vmatpush1.msra.mxu0 0.0
    %110 = vmatprep.subr.mxu0 0.0
    %111 = vmatpush1.msra.mxu0 0.0
    %112 = vmatprep.subr.mxu0 0.0
    %113 = vmatpush1.msra.mxu0 0.0
    %114 = vmatprep.subr.mxu0 0.0
    %115 = vmatpush1.msra.mxu0 0.0
    %116 = vmatprep.subr.mxu0 0.0
    %117 = vmatpush1.msra.mxu0 0.0
    %118 = vmatprep.subr.mxu0 0.0
    %119 = vmatpush1.msra.mxu0 0.0
    %120 = vmatprep.subr.mxu0 0.0
    %121 = vmatpush1.msra.mxu0 0.0
    %122 = vmatprep.subr.mxu0 0.0
    %123 = vmatpush1.msra.mxu0 0.0
    %124 = vmatprep.subr.mxu0 0.0
    %125 = vmatpush1.msra.mxu0 0.0
    %126 = vmatprep.subr.mxu0 0.0
    %127 = vmatpush1.msra.mxu0 0.0
    %128 = vmatprep.subr.mxu0 0.0
    %129 = vmatpush1.msra.mxu0 0.0
    %130 = vmatprep.subr.mxu0 0.0
    %131 = vmatpush1.msra.mxu0 0.0
    %132 = vmatprep.subr.mxu0 0.0
    %133 = vmatpush1.msra.mxu0 0.0
    %134 = vmatprep.mubr.f32.mxu0 0.0
    %135 = vmatmul.mubr.f32.gmra.mrb[0].mxu0 %v51
    %v136 = vpop.f32.mrb[0].mxu0
    %v137 = vadd.f32 0.0, %v136
    %v138 = vpop.f32.mrb[0].mxu0
    %v139 = vadd.f32 0.0, %v138
    %140 = vdwg.mxu0
    %141 = vmatprep.subr.mxu0 %v60
    %142 = vmatpush1.msra.mxu0 %v58
    %143 = vmatprep.subr.mxu0 0.0
    %144 = vmatpush1.msra.mxu0 0.0
    %145 = vmatprep.subr.mxu0 0.0
    %146 = vmatpush1.msra.mxu0 0.0
    %147 = vmatprep.subr.mxu0 0.0
    %148 = vmatpush1.msra.mxu0 0.0
    %149 = vmatprep.subr.mxu0 0.0
    %150 = vmatpush1.msra.mxu0 0.0
    %151 = vmatprep.subr.mxu0 0.0
    %152 = vmatpush1.msra.mxu0 0.0
    %153 = vmatprep.subr.mxu0 0.0
    %154 = vmatpush1.msra.mxu0 0.0
    %155 = vmatprep.subr.mxu0 0.0
    %156 = vmatpush1.msra.mxu0 0.0
    %157 = vmatprep.subr.mxu0 0.0
    %158 = vmatpush1.msra.mxu0 0.0
    %159 = vmatprep.subr.mxu0 0.0
    %160 = vmatpush1.msra.mxu0 0.0
    %161 = vmatprep.subr.mxu0 0.0
    %162 = vmatpush1.msra.mxu0 0.0
    %163 = vmatprep.subr.mxu0 0.0
    %164 = vmatpush1.msra.mxu0 0.0
    %165 = vmatprep.subr.mxu0 0.0
    %166 = vmatpush1.msra.mxu0 0.0
    %167 = vmatprep.subr.mxu0 0.0
    %168 = vmatpush1.msra.mxu0 0.0
    %169 = vmatprep.subr.mxu0 0.0
    %170 = vmatpush1.msra.mxu0 0.0
    %171 = vmatprep.subr.mxu0 0.0
    %172 = vmatpush1.msra.mxu0 0.0
    %173 = vmatprep.subr.mxu0 0.0
    %174 = vmatpush1.msra.mxu0 0.0
    %175 = vmatprep.subr.mxu0 0.0
    %176 = vmatpush1.msra.mxu0 0.0
    %177 = vmatprep.subr.mxu0 0.0
    %178 = vmatpush1.msra.mxu0 0.0
    %179 = vmatprep.subr.mxu0 0.0
    %180 = vmatpush1.msra.mxu0 0.0
    %181 = vmatprep.subr.mxu0 0.0
    %182 = vmatpush1.msra.mxu0 0.0
    %183 = vmatprep.subr.mxu0 0.0
    %184 = vmatpush1.msra.mxu0 0.0
    %185 = vmatprep.subr.mxu0 0.0
    %186 = vmatpush1.msra.mxu0 0.0
    %187 = vmatprep.subr.mxu0 0.0
    %188 = vmatpush1.msra.mxu0 0.0
    %189 = vmatprep.subr.mxu0 0.0
    %190 = vmatpush1.msra.mxu0 0.0
    %191 = vmatprep.subr.mxu0 0.0
    %192 = vmatpush1.msra.mxu0 0.0
    %193 = vmatprep.subr.mxu0 0.0
    %194 = vmatpush1.msra.mxu0 0.0
    %195 = vmatprep.subr.mxu0 0.0
    %196 = vmatpush1.msra.mxu0 0.0
    %197 = vmatprep.subr.mxu0 0.0
    %198 = vmatpush1.msra.mxu0 0.0
    %199 = vmatprep.subr.mxu0 0.0
    %200 = vmatpush1.msra.mxu0 0.0
    %201 = vmatprep.subr.mxu0 0.0
    %202 = vmatpush1.msra.mxu0 0.0
    %203 = vmatprep.subr.mxu0 0.0
    %204 = vmatpush1.msra.mxu0 0.0
    %205 = vmatprep.mubr.f32.mxu0 0.0
    %206 = vmatmul.mubr.f32.gmra.mrb[0].mxu0 %v51
    %v207 = vpop.f32.mrb[0].mxu0
    %v208 = vadd.f32 0.0, %v207
    %v209 = vpop.f32.mrb[0].mxu0
    %v210 = vadd.f32 0.0, %v209
    %211 = vdwg.mxu0
    %212 = vmatprep.subr.mxu0 %v64
    %213 = vmatpush1.msra.mxu0 %v62
    %214 = vmatprep.subr.mxu0 0.0
    %215 = vmatpush1.msra.mxu0 0.0
    %216 = vmatprep.subr.mxu0 0.0
    %217 = vmatpush1.msra.mxu0 0.0
    %218 = vmatprep.subr.mxu0 0.0
    %219 = vmatpush1.msra.mxu0 0.0
    %220 = vmatprep.subr.mxu0 0.0
    %221 = vmatpush1.msra.mxu0 0.0
    %222 = vmatprep.subr.mxu0 0.0
    %223 = vmatpush1.msra.mxu0 0.0
    %224 = vmatprep.subr.mxu0 0.0
    %225 = vmatpush1.msra.mxu0 0.0
    %226 = vmatprep.subr.mxu0 0.0
    %227 = vmatpush1.msra.mxu0 0.0
    %228 = vmatprep.subr.mxu0 0.0
    %229 = vmatpush1.msra.mxu0 0.0
    %230 = vmatprep.subr.mxu0 0.0
    %231 = vmatpush1.msra.mxu0 0.0
    %232 = vmatprep.subr.mxu0 0.0
    %233 = vmatpush1.msra.mxu0 0.0
    %234 = vmatprep.subr.mxu0 0.0
    %235 = vmatpush1.msra.mxu0 0.0
    %236 = vmatprep.subr.mxu0 0.0
    %237 = vmatpush1.msra.mxu0 0.0
    %238 = vmatprep.subr.mxu0 0.0
    %239 = vmatpush1.msra.mxu0 0.0
    %240 = vmatprep.subr.mxu0 0.0
    %241 = vmatpush1.msra.mxu0 0.0
    %242 = vmatprep.subr.mxu0 0.0
    %243 = vmatpush1.msra.mxu0 0.0
    %244 = vmatprep.subr.mxu0 0.0
    %245 = vmatpush1.msra.mxu0 0.0
    %246 = vmatprep.subr.mxu0 0.0
    %247 = vmatpush1.msra.mxu0 0.0
    %248 = vmatprep.subr.mxu0 0.0
    %249 = vmatpush1.msra.mxu0 0.0
    %250 = vmatprep.subr.mxu0 0.0
    %251 = vmatpush1.msra.mxu0 0.0
    %252 = vmatprep.subr.mxu0 0.0
    %253 = vmatpush1.msra.mxu0 0.0
    %254 = vmatprep.subr.mxu0 0.0
    %255 = vmatpush1.msra.mxu0 0.0
    %256 = vmatprep.subr.mxu0 0.0
    %257 = vmatpush1.msra.mxu0 0.0
    %258 = vmatprep.subr.mxu0 0.0
    %259 = vmatpush1.msra.mxu0 0.0
    %260 = vmatprep.subr.mxu0 0.0
    %261 = vmatpush1.msra.mxu0 0.0
    %262 = vmatprep.subr.mxu0 0.0
    %263 = vmatpush1.msra.mxu0 0.0
    %264 = vmatprep.subr.mxu0 0.0
    %265 = vmatpush1.msra.mxu0 0.0
    %266 = vmatprep.subr.mxu0 0.0
    %267 = vmatpush1.msra.mxu0 0.0
    %268 = vmatprep.subr.mxu0 0.0
    %269 = vmatpush1.msra.mxu0 0.0
    %270 = vmatprep.subr.mxu0 0.0
    %271 = vmatpush1.msra.mxu0 0.0
    %272 = vmatprep.subr.mxu0 0.0
    %273 = vmatpush1.msra.mxu0 0.0
    %274 = vmatprep.subr.mxu0 0.0
    %275 = vmatpush1.msra.mxu0 0.0
    %276 = vmatprep.mubr.f32.mxu0 0.0
    %277 = vmatmul.mubr.f32.gmra.mrb[0].mxu0 %v51
    %v278 = vpop.f32.mrb[0].mxu0
    %v279 = vadd.f32 0.0, %v278
    %v280 = vpop.f32.mrb[0].mxu0
    %v281 = vadd.f32 0.0, %v280
    %282 = vdwg.mxu0
    %283 = vmatprep.subr.mxu0 %v68
    %284 = vmatpush1.msra.mxu0 %v66
    %285 = vmatprep.subr.mxu0 0.0
    %286 = vmatpush1.msra.mxu0 0.0
    %287 = vmatprep.subr.mxu0 0.0
    %288 = vmatpush1.msra.mxu0 0.0
    %289 = vmatprep.subr.mxu0 0.0
    %290 = vmatpush1.msra.mxu0 0.0
    %291 = vmatprep.subr.mxu0 0.0
    %292 = vmatpush1.msra.mxu0 0.0
    %293 = vmatprep.subr.mxu0 0.0
    %294 = vmatpush1.msra.mxu0 0.0
    %295 = vmatprep.subr.mxu0 0.0
    %296 = vmatpush1.msra.mxu0 0.0
    %297 = vmatprep.subr.mxu0 0.0
    %298 = vmatpush1.msra.mxu0 0.0
    %299 = vmatprep.subr.mxu0 0.0
    %300 = vmatpush1.msra.mxu0 0.0
    %301 = vmatprep.subr.mxu0 0.0
    %302 = vmatpush1.msra.mxu0 0.0
    %303 = vmatprep.subr.mxu0 0.0
    %304 = vmatpush1.msra.mxu0 0.0
    %305 = vmatprep.subr.mxu0 0.0
    %306 = vmatpush1.msra.mxu0 0.0
    %307 = vmatprep.subr.mxu0 0.0
    %308 = vmatpush1.msra.mxu0 0.0
    %309 = vmatprep.subr.mxu0 0.0
    %310 = vmatpush1.msra.mxu0 0.0
    %311 = vmatprep.subr.mxu0 0.0
    %312 = vmatpush1.msra.mxu0 0.0
    %313 = vmatprep.subr.mxu0 0.0
    %314 = vmatpush1.msra.mxu0 0.0
    %315 = vmatprep.subr.mxu0 0.0
    %316 = vmatpush1.msra.mxu0 0.0
    %317 = vmatprep.subr.mxu0 0.0
    %318 = vmatpush1.msra.mxu0 0.0
    %319 = vmatprep.subr.mxu0 0.0
    %320 = vmatpush1.msra.mxu0 0.0
    %321 = vmatprep.subr.mxu0 0.0
    %322 = vmatpush1.msra.mxu0 0.0
    %323 = vmatprep.subr.mxu0 0.0
    %324 = vmatpush1.msra.mxu0 0.0
    %325 = vmatprep.subr.mxu0 0.0
    %326 = vmatpush1.msra.mxu0 0.0
    %327 = vmatprep.subr.mxu0 0.0
    %328 = vmatpush1.msra.mxu0 0.0
    %329 = vmatprep.subr.mxu0 0.0
    %330 = vmatpush1.msra.mxu0 0.0
    %331 = vmatprep.subr.mxu0 0.0
    %332 = vmatpush1.msra.mxu0 0.0
    %333 = vmatprep.subr.mxu0 0.0
    %334 = vmatpush1.msra.mxu0 0.0
    %335 = vmatprep.subr.mxu0 0.0
    %336 = vmatpush1.msra.mxu0 0.0
    %337 = vmatprep.subr.mxu0 0.0
    %338 = vmatpush1.msra.mxu0 0.0
    %339 = vmatprep.subr.mxu0 0.0
    %340 = vmatpush1.msra.mxu0 0.0
    %341 = vmatprep.subr.mxu0 0.0
    %342 = vmatpush1.msra.mxu0 0.0
    %343 = vmatprep.subr.mxu0 0.0
    %344 = vmatpush1.msra.mxu0 0.0
    %345 = vmatprep.subr.mxu0 0.0
    %346 = vmatpush1.msra.mxu0 0.0
    %347 = vmatprep.mubr.f32.mxu0 0.0
    %348 = vmatmul.mubr.f32.gmra.mrb[0].mxu0 %v51
    %v349 = vpop.f32.mrb[0].mxu0
    %v350 = vadd.f32 0.0, %v349
    %v351 = vpop.f32.mrb[0].mxu0
    %v352 = vadd.f32 0.0, %v351
    %353 = vdwg.mxu0
    %v362 = vcombine.low %v137, %v139
    %v363 = vcombine.low %v208, %v210
    %v364 = vcombine.low %v279, %v281
    %v365 = vcombine.low %v350, %v352
    %370 = vst [vmem:[#allocation7] sm:$0xff] %v362
    %371 = vst [vmem:[#allocation7 + $0x8] sm:$0xff] %v363
    %372 = vst [vmem:[#allocation7 + $0x10] sm:$0xff] %v364
    %373 = vst [vmem:[#allocation7 + $0x18] sm:$0xff] %v365
    // Predicated region
    $region18: #{tpu_custom_call.1} parent=1 // pred_check
      _
    $region19: #{tpu_custom_call.1} parent=1 // pred_check_branch
      %375 = sbr.rel (0) target = $region21
    $region20: #{tpu_custom_call.1} parent=1 // pred_region
      %s377 = ssub.s32 512, 512
      %378 = vsyncadd [#allocation4], %s377
      %s380 = sshll.u32 [#allocation7], 4
      %s381 = int_to_ptr.vmem [resolvable:$true] %s380
      %383 = dma.vmem_to_hbm [thread:$0]  %s381, 512, %s2, [#allocation4]
    $region21: #{tpu_custom_call.1} parent=1 // pred_fallthru
      _
    // Predicated region
    $region22: #{tpu_custom_call.1} parent=1 // pred_check
      _
    $region23: #{tpu_custom_call.1} parent=1 // pred_check_branch
      %385 = sbr.rel (0) target = $region25
    $region24: #{tpu_custom_call.1} parent=1 // pred_region
      %386 = dma.done [#allocation4], 512
    $region25: #{tpu_custom_call.1} parent=1 // pred_fallthru
      _
    %387 = vsyncpa [#allocation3], 1
    %388 = vsyncpa [#allocation6], 1
    %389 = vsyncpa [#allocation4], 1

</llo_original>
